<compile_context>
chip_gen: v7x
topology: tpu7x:2x2x1
jax: 0.10.0
libtpu: 0.0.40
codegen_flags: <defaults>
</compile_context>

<pallas_src>
import jax
import jax.numpy as jnp
from jax.experimental import pallas as pl
from jax.experimental.pallas import tpu as pltpu


# --------------------------------------------------------------------------- #
# Kernels
# --------------------------------------------------------------------------- #
def _apply_rotation(x_ref, o_ref, cos_t, sin_t, even):
    """out = x * cos + partner(x) * sin on one (TB, TS, D) block.

    cos_t[m, 2i] = cos_t[m, 2i+1] = cos(m * inv_i)
    sin_t[m, 2i] = -sin(m * inv_i),  sin_t[m, 2i+1] = +sin(m * inv_i)
    so a single FMA per lane finishes the rotation after the pair swap.
    """
    d = o_ref.shape[-1]
    for bi in range(x_ref.shape[0]):              # static unroll over batch rows
        # NOTE: for bf16 x on v6e/v7x this upcast could be skipped (bf16 VALU);
        # kept in f32 for accuracy and v5e portability.
        x = x_ref[bi].astype(jnp.float32)         # (TS, D)
        x_next = pltpu.roll(x, d - 1, axis=1)     # x_next[j] = x[(j + 1) % d]
        x_prev = pltpu.roll(x, 1, axis=1)         # x_prev[j] = x[(j - 1) % d]
        swap = jnp.where(even, x_next, x_prev)    # pairwise partner of lane j
        # (the wrap-around lanes of the rolls always land on the masked-out side)
        o_ref[bi] = (x * cos_t + swap * sin_t).astype(o_ref.dtype)


def rope_kernel_fused(m_ref, inv_ref, x_ref, o_ref, cos_scr, sin_scr):
    """cos/sin computed in-kernel (EUP), cached in VMEM scratch per seq tile."""
    ts, d = cos_scr.shape
    lane = jax.lax.broadcasted_iota(jnp.int32, (ts, d), dimension=1)
    even = (lane & 1) == 0                        # constant parity mask (folds)

    @pl.when(pl.program_id(1) == 0)               # first inner batch step only
    def _():
        freqs = m_ref[...] * inv_ref[...]         # (TS,1)*(1,D) -> (TS,D)
        cos_scr[...] = jnp.cos(freqs)
        s = jnp.sin(freqs)
        sin_scr[...] = jnp.where(even, -s, s)     # sign baked per lane parity

    _apply_rotation(x_ref, o_ref, cos_scr[...], sin_scr[...], even)


def rope_kernel_tables(cos_ref, sin_ref, x_ref, o_ref):
    """Fallback: interleaved f32 cos/sin tables streamed from HBM."""
    ts, d = cos_ref.shape
    lane = jax.lax.broadcasted_iota(jnp.int32, (ts, d), dimension=1)
    even = (lane & 1) == 0
    _apply_rotation(x_ref, o_ref, cos_ref[...], sin_ref[...], even)


# --------------------------------------------------------------------------- #
# Tiling / VMEM heuristics
# --------------------------------------------------------------------------- #
def _vmem_budget_bytes():
    """Per-core VMEM budget with ~25% headroom; generation-aware."""
    cap = None
    try:
        cap = getattr(pltpu.get_tpu_info(), "vmem_capacity_bytes", None)
    except Exception:
        cap = None
    if not cap:
        cap = 64 * 1024 * 1024          # conservative default (v7x per-TC size)
    return min(int(cap) * 3 // 4, 96 * 1024 * 1024)


def _pick_tiles(B, S, D, x_itemsize, budget_bytes, min_steps=8, max_tb=8):
    """Pick (seq_tile, batch_tile) that divide (S, B), fit VMEM, and keep the
    pipeline fed (>= min_steps grid steps when possible)."""
    row_align = 8 if x_itemsize >= 4 else 16      # bf16 packs 16 rows / sublane grp
    ts_cands = [t for t in range(row_align, S + 1, row_align) if S % t == 0]
    if not ts_cands:
        ts_cands = [S]                            # full axis always legal
    tb_cands = [t for t in range(1, min(B, max_tb) + 1) if B % t == 0]

    def fits(tb, ts):
        io = 2 * 2 * tb * ts * D * x_itemsize     # x + out blocks, double-buffered
        tables = 2 * ts * D * 4                   # cos/sin f32 scratch (single)
        temps = 5 * tb * ts * D * 4               # in-kernel f32 temporaries
        return io + tables + temps + (2 << 20) <= budget_bytes

    best = None
    for ts in ts_cands:
        for tb in tb_cands:
            if not fits(tb, ts):
                continue
            steps = (S // ts) * (B // tb)
            block_bytes = tb * ts * D * x_itemsize
            key = (steps >= min_steps, block_bytes, ts)
            if best is None or key > best[1]:
                best = ((ts, tb), key)
    if best is None:                              # nothing fits: smallest tile
        return ts_cands[0], 1
    return best[0]


# --------------------------------------------------------------------------- #
# Wrapper
# --------------------------------------------------------------------------- #
def rope_pallas(x, m, inverse, *, seq_tile=None, batch_tile=None):
    """x: [B, S, D], m: [S] positions, inverse: [D//2] inverse frequencies."""
    B, S, D = x.shape
    assert D % 2 == 0

    budget = _vmem_budget_bytes()
    ts, tb = _pick_tiles(B, S, D, x.dtype.itemsize, budget)
    if seq_tile is not None:
        ts = seq_tile
    if batch_tile is not None:
        tb = batch_tile
    assert S % ts == 0 and B % tb == 0, "tiles must divide the array dims"
    grid = (S // ts, B // tb)     # seq outer (tables reused / megacore), batch inner

    x_spec = pl.BlockSpec((tb, ts, D), lambda s, b: (b, s, 0))
    out_spec = pl.BlockSpec((tb, ts, D), lambda s, b: (b, s, 0))
    cparams = pltpu.CompilerParams(
        dimension_semantics=("parallel", "arbitrary"),
        vmem_limit_bytes=budget,
    )
    inv_f32 = inverse.astype(jnp.float32)

    def _fused():
        # lane-interleaved inverse frequencies [f0,f0,f1,f1,...] + column positions
        inv_il = jnp.repeat(inv_f32, 2)[None, :]              # (1, D)
        m_col = m.astype(jnp.float32)[:, None]                # (S, 1)
        return pl.pallas_call(
            rope_kernel_fused,
            out_shape=jax.ShapeDtypeStruct((B, S, D), x.dtype),
            grid=grid,
            in_specs=[
                pl.BlockSpec((ts, 1), lambda s, b: (s, 0)),   # positions (seq tile)
                pl.BlockSpec((1, D), lambda s, b: (0, 0)),    # interleaved inv freqs
                x_spec,
            ],
            out_specs=out_spec,
            scratch_shapes=[pltpu.VMEM((ts, D), jnp.float32),
                            pltpu.VMEM((ts, D), jnp.float32)],
            compiler_params=cparams,
        )(m_col, inv_il, x)

    def _streamed():
        freqs = jnp.outer(m.astype(jnp.float32), inv_f32)     # (S, D//2)
        cos_il = jnp.repeat(jnp.cos(freqs), 2, axis=-1)       # [c0,c0,c1,c1,...]
        sin = jnp.sin(freqs)
        sin_il = jnp.stack([-sin, sin], axis=-1).reshape(S, D)  # [-s0,s0,-s1,s1,...]
        return pl.pallas_call(
            rope_kernel_tables,
            out_shape=jax.ShapeDtypeStruct((B, S, D), x.dtype),
            grid=grid,
            in_specs=[
                pl.BlockSpec((ts, D), lambda s, b: (s, 0)),   # cos table (batch-invariant)
                pl.BlockSpec((ts, D), lambda s, b: (s, 0)),   # signed sin table
                x_spec,
            ],
            out_specs=out_spec,
            compiler_params=cparams,
        )(cos_il, sin_il, x)

    try:
        return _fused()
    except Exception:
        # TODO(synk): drop this fallback once in-kernel sin/cos lowering is
        # confirmed on every target Mosaic version.
        return _streamed()


def make_inverse(d_model, base=10000):
    # matches: 1 / base ** (2 * torch.arange(0, d_model, 2) / d_model)
    k = jnp.arange(0, d_model, 2, dtype=jnp.float32)
    return 1.0 / (base ** (2.0 * k / d_model))


def rope_reference(x, m, inverse):
    # pure-JAX reference mirroring the PyTorch forward
    freqs = jnp.outer(m.astype(jnp.float32), inverse)
    cos_vals = jnp.cos(freqs)
    sin_vals = jnp.sin(freqs)
    x_even = x[..., 0::2]
    x_odd = x[..., 1::2]
    rotated_even = x_even * cos_vals - x_odd * sin_vals
    rotated_odd = x_even * sin_vals + x_odd * cos_vals
    result = jnp.stack([rotated_even, rotated_odd], axis=-1)
    return result.reshape(x.shape)


if __name__ == "__main__":
    batch, seq_len, d_model = 2, 16, 128   # small, lane-dense (D multiple of 128)
    base = 10000

    key = jax.random.PRNGKey(0)
    x = jax.random.normal(key, (batch, seq_len, d_model), dtype=jnp.float32)
    m = jnp.arange(seq_len, dtype=jnp.float32)   # positions
    inverse = make_inverse(d_model, base)        # deterministic "buffer"

    out = rope_pallas(x, m, inverse)
    out = jax.block_until_ready(out)

    ref = rope_reference(x, m, inverse)
    assert out.shape == (batch, seq_len, d_model)
    # tolerance covers tiny differences between in-kernel and XLA sin/cos
    assert jnp.allclose(out, ref, atol=1e-3, rtol=1e-3)

    print("KERNEL_OK")
</pallas_src>

<mosaic_0001>
module attributes {stable_mosaic.version = 11 : i64} {
  func.func @rope_kernel_fused(%arg0: i32, %arg1: i32, %arg2: memref<16x1xf32, #tpu.memory_space<vmem>>, %arg3: memref<1x128xf32, #tpu.memory_space<vmem>>, %arg4: memref<2x16x128xf32, #tpu.memory_space<vmem>>, %arg5: memref<2x16x128xf32, #tpu.memory_space<vmem>>, %arg6: memref<16x128xf32, #tpu.memory_space<vmem>>, %arg7: memref<16x128xf32, #tpu.memory_space<vmem>>) attributes {dimension_semantics = [#tpu.dimension_semantics<parallel>, #tpu.dimension_semantics<arbitrary>], iteration_bounds = array<i64: 1, 1>, scalar_prefetch = 0 : i64, scratch_operands = 2 : i64, tpu.core_type = #tpu.core_type<tc>, window_params = [{transform_indices = @transform_0, window_bounds = array<i64: 16, 1>}, {pipeline_mode = #tpu.pipeline_mode<synchronous>, transform_indices = @transform_1, window_bounds = array<i64: 1, 128>}, {transform_indices = @transform_2, window_bounds = array<i64: 2, 16, 128>}, {transform_indices = @transform_3, window_bounds = array<i64: 2, 16, 128>}]} {
    %0 = tpu.iota {dimensions = array<i32: 1>} : vector<16x128xi32>
    %c1_i32 = arith.constant 1 : i32
    %1 = vector.broadcast %c1_i32 : i32 to vector<16x128xi32>
    %2 = arith.andi %0, %1 : vector<16x128xi32>
    %c0_i32 = arith.constant 0 : i32
    %3 = vector.broadcast %c0_i32 : i32 to vector<16x128xi32>
    %4 = arith.cmpi eq, %2, %3 : vector<16x128xi32>
    %c0_i32_0 = arith.constant 0 : i32
    %5 = arith.cmpi eq, %arg1, %c0_i32_0 : i32
    %6 = arith.extui %5 : i1 to i32
    %c0_i32_1 = arith.constant 0 : i32
    %7 = arith.cmpi ne, %6, %c0_i32_1 : i32
    scf.if %7 {
      %c0_19 = arith.constant 0 : index
      %c0_20 = arith.constant 0 : index
      %32 = vector.load %arg2[%c0_19, %c0_20] : memref<16x1xf32, #tpu.memory_space<vmem>>, vector<16x1xf32>
      %c0_21 = arith.constant 0 : index
      %c0_22 = arith.constant 0 : index
      %33 = vector.load %arg3[%c0_21, %c0_22] : memref<1x128xf32, #tpu.memory_space<vmem>>, vector<1x128xf32>
      %34 = vector.broadcast %32 : vector<16x1xf32> to vector<16x128xf32>
      %35 = vector.broadcast %33 : vector<1x128xf32> to vector<16x128xf32>
      %36 = arith.mulf %34, %35 : vector<16x128xf32>
      %37 = math.cos %36 : vector<16x128xf32>
      %c0_23 = arith.constant 0 : index
      %c0_24 = arith.constant 0 : index
      %38 = vector.load %arg6[%c0_23, %c0_24] : memref<16x128xf32, #tpu.memory_space<vmem>>, vector<16x128xf32>
      tpu.vector_store %arg6[%c0_23, %c0_24], %37 {strides = array<i32>} : memref<16x128xf32, #tpu.memory_space<vmem>>, vector<16x128xf32>,
      %39 = math.sin %36 : vector<16x128xf32>
      %cst = arith.constant 0.000000e+00 : f32
      %40 = vector.broadcast %cst : f32 to vector<16x128xf32>
      %41 = arith.subf %40, %39 : vector<16x128xf32>
      %42 = arith.select %4, %41, %39 : vector<16x128xi1>, vector<16x128xf32>
      %c0_25 = arith.constant 0 : index
      %c0_26 = arith.constant 0 : index
      %43 = vector.load %arg7[%c0_25, %c0_26] : memref<16x128xf32, #tpu.memory_space<vmem>>, vector<16x128xf32>
      tpu.vector_store %arg7[%c0_25, %c0_26], %42 {strides = array<i32>} : memref<16x128xf32, #tpu.memory_space<vmem>>, vector<16x128xf32>,
    } else {
    }
    %c0 = arith.constant 0 : index
    %c0_2 = arith.constant 0 : index
    %8 = vector.load %arg6[%c0, %c0_2] : memref<16x128xf32, #tpu.memory_space<vmem>>, vector<16x128xf32>
    %c0_3 = arith.constant 0 : index
    %c0_4 = arith.constant 0 : index
    %9 = vector.load %arg7[%c0_3, %c0_4] : memref<16x128xf32, #tpu.memory_space<vmem>>, vector<16x128xf32>
    %c0_5 = arith.constant 0 : index
    %c0_6 = arith.constant 0 : index
    %c0_7 = arith.constant 0 : index
    %10 = vector.load %arg4[%c0_5, %c0_6, %c0_7] : memref<2x16x128xf32, #tpu.memory_space<vmem>>, vector<1x16x128xf32>
    %11 = vector.shape_cast %10 : vector<1x16x128xf32> to vector<16x128xf32>
    %c127_i32 = arith.constant 127 : i32
    %12 = tpu.dynamic_rotate %11 by %c127_i32 dim 1 : vector<16x128xf32>, i32 -> vector<16x128xf32>
    %c1_i32_8 = arith.constant 1 : i32
    %13 = tpu.dynamic_rotate %11 by %c1_i32_8 dim 1 : vector<16x128xf32>, i32 -> vector<16x128xf32>
    %14 = arith.select %4, %12, %13 : vector<16x128xi1>, vector<16x128xf32>
    %15 = arith.mulf %11, %8 : vector<16x128xf32>
    %16 = arith.mulf %14, %9 : vector<16x128xf32>
    %17 = arith.addf %15, %16 : vector<16x128xf32>
    %c0_9 = arith.constant 0 : index
    %c0_10 = arith.constant 0 : index
    %c0_11 = arith.constant 0 : index
    %18 = vector.load %arg5[%c0_9, %c0_10, %c0_11] : memref<2x16x128xf32, #tpu.memory_space<vmem>>, vector<1x16x128xf32>
    %19 = vector.shape_cast %18 : vector<1x16x128xf32> to vector<16x128xf32>
    %20 = vector.shape_cast %17 : vector<16x128xf32> to vector<1x16x128xf32>
    tpu.vector_store %arg5[%c0_9, %c0_10, %c0_11], %20 {strides = array<i32>} : memref<2x16x128xf32, #tpu.memory_space<vmem>>, vector<1x16x128xf32>,
    %c1 = arith.constant 1 : index
    %c0_12 = arith.constant 0 : index
    %c0_13 = arith.constant 0 : index
    %21 = vector.load %arg4[%c1, %c0_12, %c0_13] : memref<2x16x128xf32, #tpu.memory_space<vmem>>, vector<1x16x128xf32>
    %22 = vector.shape_cast %21 : vector<1x16x128xf32> to vector<16x128xf32>
    %c127_i32_14 = arith.constant 127 : i32
    %23 = tpu.dynamic_rotate %22 by %c127_i32_14 dim 1 : vector<16x128xf32>, i32 -> vector<16x128xf32>
    %c1_i32_15 = arith.constant 1 : i32
    %24 = tpu.dynamic_rotate %22 by %c1_i32_15 dim 1 : vector<16x128xf32>, i32 -> vector<16x128xf32>
    %25 = arith.select %4, %23, %24 : vector<16x128xi1>, vector<16x128xf32>
    %26 = arith.mulf %22, %8 : vector<16x128xf32>
    %27 = arith.mulf %25, %9 : vector<16x128xf32>
    %28 = arith.addf %26, %27 : vector<16x128xf32>
    %c1_16 = arith.constant 1 : index
    %c0_17 = arith.constant 0 : index
    %c0_18 = arith.constant 0 : index
    %29 = vector.load %arg5[%c1_16, %c0_17, %c0_18] : memref<2x16x128xf32, #tpu.memory_space<vmem>>, vector<1x16x128xf32>
    %30 = vector.shape_cast %29 : vector<1x16x128xf32> to vector<16x128xf32>
    %31 = vector.shape_cast %28 : vector<16x128xf32> to vector<1x16x128xf32>
    tpu.vector_store %arg5[%c1_16, %c0_17, %c0_18], %31 {strides = array<i32>} : memref<2x16x128xf32, #tpu.memory_space<vmem>>, vector<1x16x128xf32>,
    return
  }
  func.func @transform_0(%arg0: i32, %arg1: i32) -> (i32, i32) {
    %c0_i32 = arith.constant 0 : i32
    %c0_i32_0 = arith.constant 0 : i32
    return %arg0, %c0_i32 : i32, i32
  }
  func.func @transform_1(%arg0: i32, %arg1: i32) -> (i32, i32) {
    %c0_i32 = arith.constant 0 : i32
    %c0_i32_0 = arith.constant 0 : i32
    %c0_i32_1 = arith.constant 0 : i32
    return %c0_i32, %c0_i32_0 : i32, i32
  }
  func.func @transform_2(%arg0: i32, %arg1: i32) -> (i32, i32, i32) {
    %c0_i32 = arith.constant 0 : i32
    %c0_i32_0 = arith.constant 0 : i32
    return %arg1, %arg0, %c0_i32 : i32, i32, i32
  }
  func.func @transform_3(%arg0: i32, %arg1: i32) -> (i32, i32, i32) {
    %c0_i32 = arith.constant 0 : i32
    %c0_i32_0 = arith.constant 0 : i32
    return %arg1, %arg0, %c0_i32 : i32, i32, i32
  }
}

module attributes {stable_mosaic.version = 11 : i64} {
  func.func @rope_kernel_tables(%arg0: i32, %arg1: i32, %arg2: memref<16x128xf32, #tpu.memory_space<vmem>>, %arg3: memref<16x128xf32, #tpu.memory_space<vmem>>, %arg4: memref<2x16x128xf32, #tpu.memory_space<vmem>>, %arg5: memref<2x16x128xf32, #tpu.memory_space<vmem>>) attributes {dimension_semantics = [#tpu.dimension_semantics<parallel>, #tpu.dimension_semantics<arbitrary>], iteration_bounds = array<i64: 1, 1>, scalar_prefetch = 0 : i64, scratch_operands = 0 : i64, tpu.core_type = #tpu.core_type<tc>, window_params = [{transform_indices = @transform_0, window_bounds = array<i64: 16, 128>}, {transform_indices = @transform_1, window_bounds = array<i64: 16, 128>}, {transform_indices = @transform_2, window_bounds = array<i64: 2, 16, 128>}, {transform_indices = @transform_3, window_bounds = array<i64: 2, 16, 128>}]} {
    %0 = tpu.iota {dimensions = array<i32: 1>} : vector<16x128xi32>
    %c1_i32 = arith.constant 1 : i32
    %1 = vector.broadcast %c1_i32 : i32 to vector<16x128xi32>
    %2 = arith.andi %0, %1 : vector<16x128xi32>
    %c0_i32 = arith.constant 0 : i32
    %3 = vector.broadcast %c0_i32 : i32 to vector<16x128xi32>
    %4 = arith.cmpi eq, %2, %3 : vector<16x128xi32>
    %c0 = arith.constant 0 : index
    %c0_0 = arith.constant 0 : index
    %5 = vector.load %arg2[%c0, %c0_0] : memref<16x128xf32, #tpu.memory_space<vmem>>, vector<16x128xf32>
    %c0_1 = arith.constant 0 : index
    %c0_2 = arith.constant 0 : index
    %6 = vector.load %arg3[%c0_1, %c0_2] : memref<16x128xf32, #tpu.memory_space<vmem>>, vector<16x128xf32>
    %c0_3 = arith.constant 0 : index
    %c0_4 = arith.constant 0 : index
    %c0_5 = arith.constant 0 : index
    %7 = vector.load %arg4[%c0_3, %c0_4, %c0_5] : memref<2x16x128xf32, #tpu.memory_space<vmem>>, vector<1x16x128xf32>
    %8 = vector.shape_cast %7 : vector<1x16x128xf32> to vector<16x128xf32>
    %c127_i32 = arith.constant 127 : i32
    %9 = tpu.dynamic_rotate %8 by %c127_i32 dim 1 : vector<16x128xf32>, i32 -> vector<16x128xf32>
    %c1_i32_6 = arith.constant 1 : i32
    %10 = tpu.dynamic_rotate %8 by %c1_i32_6 dim 1 : vector<16x128xf32>, i32 -> vector<16x128xf32>
    %11 = arith.select %4, %9, %10 : vector<16x128xi1>, vector<16x128xf32>
    %12 = arith.mulf %8, %5 : vector<16x128xf32>
    %13 = arith.mulf %11, %6 : vector<16x128xf32>
    %14 = arith.addf %12, %13 : vector<16x128xf32>
    %c0_7 = arith.constant 0 : index
    %c0_8 = arith.constant 0 : index
    %c0_9 = arith.constant 0 : index
    %15 = vector.load %arg5[%c0_7, %c0_8, %c0_9] : memref<2x16x128xf32, #tpu.memory_space<vmem>>, vector<1x16x128xf32>
    %16 = vector.shape_cast %15 : vector<1x16x128xf32> to vector<16x128xf32>
    %17 = vector.shape_cast %14 : vector<16x128xf32> to vector<1x16x128xf32>
    tpu.vector_store %arg5[%c0_7, %c0_8, %c0_9], %17 {strides = array<i32>} : memref<2x16x128xf32, #tpu.memory_space<vmem>>, vector<1x16x128xf32>,
    %c1 = arith.constant 1 : index
    %c0_10 = arith.constant 0 : index
    %c0_11 = arith.constant 0 : index
    %18 = vector.load %arg4[%c1, %c0_10, %c0_11] : memref<2x16x128xf32, #tpu.memory_space<vmem>>, vector<1x16x128xf32>
    %19 = vector.shape_cast %18 : vector<1x16x128xf32> to vector<16x128xf32>
    %c127_i32_12 = arith.constant 127 : i32
    %20 = tpu.dynamic_rotate %19 by %c127_i32_12 dim 1 : vector<16x128xf32>, i32 -> vector<16x128xf32>
    %c1_i32_13 = arith.constant 1 : i32
    %21 = tpu.dynamic_rotate %19 by %c1_i32_13 dim 1 : vector<16x128xf32>, i32 -> vector<16x128xf32>
    %22 = arith.select %4, %20, %21 : vector<16x128xi1>, vector<16x128xf32>
    %23 = arith.mulf %19, %5 : vector<16x128xf32>
    %24 = arith.mulf %22, %6 : vector<16x128xf32>
    %25 = arith.addf %23, %24 : vector<16x128xf32>
    %c1_14 = arith.constant 1 : index
    %c0_15 = arith.constant 0 : index
    %c0_16 = arith.constant 0 : index
    %26 = vector.load %arg5[%c1_14, %c0_15, %c0_16] : memref<2x16x128xf32, #tpu.memory_space<vmem>>, vector<1x16x128xf32>
    %27 = vector.shape_cast %26 : vector<1x16x128xf32> to vector<16x128xf32>
    %28 = vector.shape_cast %25 : vector<16x128xf32> to vector<1x16x128xf32>
    tpu.vector_store %arg5[%c1_14, %c0_15, %c0_16], %28 {strides = array<i32>} : memref<2x16x128xf32, #tpu.memory_space<vmem>>, vector<1x16x128xf32>,
    return
  }
  func.func @transform_0(%arg0: i32, %arg1: i32) -> (i32, i32) {
    %c0_i32 = arith.constant 0 : i32
    %c0_i32_0 = arith.constant 0 : i32
    return %arg0, %c0_i32 : i32, i32
  }
  func.func @transform_1(%arg0: i32, %arg1: i32) -> (i32, i32) {
    %c0_i32 = arith.constant 0 : i32
    %c0_i32_0 = arith.constant 0 : i32
    return %arg0, %c0_i32 : i32, i32
  }
  func.func @transform_2(%arg0: i32, %arg1: i32) -> (i32, i32, i32) {
    %c0_i32 = arith.constant 0 : i32
    %c0_i32_0 = arith.constant 0 : i32
    return %arg1, %arg0, %c0_i32 : i32, i32, i32
  }
  func.func @transform_3(%arg0: i32, %arg1: i32) -> (i32, i32, i32) {
    %c0_i32 = arith.constant 0 : i32
    %c0_i32_0 = arith.constant 0 : i32
    return %arg1, %arg0, %c0_i32 : i32, i32, i32
  }
}

</mosaic_0001>

<llo_original>
// kernel: tpu_custom_call.1
$region0: #{tpu_custom_call.1}
  #allocation0 [shape = 'u32[]', space=smem, size = 0x4, offset = 0x4, fixed_abs, tag = 'smem constant byte address 0x4 - core index']
  #allocation1 [shape = 'u32[144,128]{1,0:T(1,128)}', space=vmem, size = 0x12000, scoped, tag = 'internal scratch']
  #allocation2 [shape = 'f32[16,128]{1,0:T(8,128)}', space=vmem, size = 0x2000, scoped, tag = 'scratch operand']
  #allocation3 [shape = 'f32[16,128]{1,0:T(8,128)}', space=vmem, size = 0x2000, scoped, tag = 'scratch operand']
  %s0 = inlined_call_operand.vmem [shape: f32[16,1], index: 0, kind: input, shape index: {}]
  %s1 = inlined_call_operand.vmem [shape: f32[1,128], index: 1, kind: input, shape index: {}]
  %s2 = inlined_call_operand.hbm [shape: f32[2,16,128], index: 2, kind: input, shape index: {}]
  %s3 = inlined_call_operand.hbm [shape: f32[2,16,128], index: 3, kind: output, shape index: {}]
  %s4 = sld [smem:[#allocation0]]
  $region30: #{tpu_custom_call.1} parent=0
    _
  %s6 = ssub.s32 1, %s4
  %s7 = scalar_select 0, %s6, %s4
  $region1: #{tpu_custom_call.1} parent=0
    #allocation4 [shape = 'u8[16384]{0}', space=vmem, size = 0x4000, scoped, tag = 'input window, operand 2, single buffered']
    #allocation5 [shape = 's32[1]{0}', space=sflag, size = 0x4, scoped, tag = 'scoped memory for tpu_custom_call.1']
    #allocation6 [shape = 's32[1]{0}', space=sflag, size = 0x4, scoped, tag = 'scoped memory for tpu_custom_call.1']
    #allocation7 [shape = 'u8[16384]{0}', space=vmem, size = 0x4000, scoped, tag = 'output window, operand 0, single buffered']
    %8 = vsyncpa [#allocation5], 0
    %9 = vsyncpa [#allocation6], 0
    // Predicated region
    $region2: #{tpu_custom_call.1} parent=1 // pred_check
      _
    $region3: #{tpu_custom_call.1} parent=1 // pred_check_branch
      %11 = sbr.rel (0) target = $region5
    $region4: #{tpu_custom_call.1} parent=1 // pred_region
      _
    $region5: #{tpu_custom_call.1} parent=1 // pred_fallthru
      _
    // Predicated region
    $region6: #{tpu_custom_call.1} parent=1 // pred_check
      _
    $region7: #{tpu_custom_call.1} parent=1 // pred_check_branch
      %13 = sbr.rel (0) target = $region9
    $region8: #{tpu_custom_call.1} parent=1 // pred_region
      _
    $region9: #{tpu_custom_call.1} parent=1 // pred_fallthru
      _
    // Predicated region
    $region10: #{tpu_custom_call.1} parent=1 // pred_check
      _
    $region11: #{tpu_custom_call.1} parent=1 // pred_check_branch
      %15 = sbr.rel (0) target = $region13
    $region12: #{tpu_custom_call.1} parent=1 // pred_region
      %s17 = ssub.s32 512, 512
      %18 = vsyncadd [#allocation5], %s17
      %s19 = sshll.u32 [#allocation4], 4
      %s20 = int_to_ptr.vmem [resolvable:$true] %s19
      %25 = dma.hbm_to_vmem [thread:$0]  %s2, 512, %s20, [#allocation5], 128, 128, 8
    $region13: #{tpu_custom_call.1} parent=1 // pred_fallthru
      _
    // Predicated region
    $region14: #{tpu_custom_call.1} parent=1 // pred_check
      _
    $region15: #{tpu_custom_call.1} parent=1 // pred_check_branch
      %27 = sbr.rel (0) target = $region17
    $region16: #{tpu_custom_call.1} parent=1 // pred_region
      %28 = dma.done [#allocation5], 512
    $region17: #{tpu_custom_call.1} parent=1 // pred_fallthru
      _
    %v29 = vlaneseq
    %v30 = vand.u32 %v29, 127
    %v31 = vand.u32 %v30, 1
    %vm32 = vcmp.eq.s32.totalorder %v31, 0
    %p33 = scmp.eq.s32.totalorder 0, 0
    // Predicated region
    $region18: #{tpu_custom_call.1} parent=1 // pred_check
      %p34 = pneg %p33
    $region19: #{tpu_custom_call.1} parent=1 // pred_check_branch
      %36 = sbr.rel (%p34) target = $region21
    $region20: #{tpu_custom_call.1} parent=1 // pred_region
      %v37 = vld [vmem:[%s0] sm:$0xff]
      %v38 = vld [vmem:[%s0 + $0x8] sm:$0xff]
      %v39 = vld [vmem:[%s1] sm:$0x1]
      %41 = vset.pattern.permute.xlu0 0
      %42 = vperm.xlu0 %41, %v37
      %v43 = vpop.permute.xlu0 %42
      %46 = vset.pattern.permute.xlu0 0
      %47 = vperm.xlu0 %46, %v38
      %v48 = vpop.permute.xlu0 %47
      %v51 = vlaneseq
      %v52 = vshrl.u32 %v51, 7
      %v53 = vsub.s32 0, %v52
      %v54 = vrot.slane %v39, %v53
      %v56 = vmul.f32 %v43, %v54
      %v57 = vmul.f32 %v48, %v54
      %v58 = vand.u32 2147483647, %v56
      %vm59 = vcmp.le.f32.partialorder %v58, 0.7853982
      %vm60 = vcmp.lt.s32.totalorder %v56, 0
      %v61 = vand.u32 %v56, 2139095040
      %v62 = vshrl.u32 %v61, 23
      %v63 = vsub.s32 %v62, 127
      %v64 = vand.u32 2147483647, %v56
      %v65 = vand.u32 %v64, 8388607
      %v66 = vor.u32 %v65, 8388608
      %v67 = vsub.s32 0, %v66
      %v68 = vadd.s32 %v63, 1
      %vm69 = vcmp.gt.s32.totalorder %v68, 0
      %v70 = vsel %vm69, %v68, 0
      %v71 = vshrl.u32 %v70, 5
      %v72 = vand.u32 %v70, 31
      %v73 = vsub.s32 32, %v72
      %v74 = vshrl.u32 683565275, %v73
      %v75 = vshll.u32 683565275, %v72
      %v76 = vshrl.u32 2475754826, %v73
      %v77 = vor.u32 %v75, %v76
      %v78 = vshll.u32 2475754826, %v72
      %v79 = vshrl.u32 2131351028, %v73
      %v80 = vor.u32 %v78, %v79
      %v81 = vshll.u32 2131351028, %v72
      %v82 = vshrl.u32 2102212464, %v73
      %v83 = vor.u32 %v81, %v82
      %v84 = vshll.u32 2102212464, %v72
      %v85 = vshrl.u32 920167782, %v73
      %v86 = vor.u32 %v84, %v85
      %v87 = vshll.u32 920167782, %v72
      %v88 = vshrl.u32 1326507024, %v73
      %v89 = vor.u32 %v87, %v88
      %vm90 = vcmp.lt.s32.totalorder %v71, 1
      %vm91 = vcmp.lt.s32.totalorder %v71, 2
      %vm92 = vcmp.lt.s32.totalorder %v71, 3
      %vm93 = vcmp.lt.s32.totalorder %v71, 4
      %v94 = vsel %vm90, %v74, %v77
      %v95 = vsel %vm93, %v83, 2102212464
      %v96 = vsel %vm92, %v80, %v95
      %v97 = vsel %vm91, %v94, %v96
      %v98 = vsel %vm90, %v77, %v80
      %v99 = vsel %vm93, %v86, 920167782
      %v100 = vsel %vm92, %v83, %v99
      %v101 = vsel %vm91, %v98, %v100
      %v102 = vsel %vm90, %v80, %v83
      %v103 = vsel %vm93, %v89, 1326507024
      %v104 = vsel %vm92, %v86, %v103
      %v105 = vsel %vm91, %v102, %v104
      %v106 = vshll.u32 %v66, 8
      %v107 = vmul.u32.u64.compose %v106, %v105
      %v108 = vextract.low.u32 %v107
      %v109 = vextract.high.u32 %v107
      %v110 = vmul.u32.u64.compose %v106, %v101
      %v111 = vextract.low.u32 %v110
      %v112 = vextract.high.u32 %v110
      %v113 = vmul.u32 %v106, %v97
      %v114 = vadd.s32 %v109, %v111
      %vm115 = vc.u32 %v109, %v111
      %v116 = vadd.s32 %v112, 1
      %v117 = vsel %vm115, %v116, %v112
      %v118 = vadd.s32 %v113, %v117
      %v119 = vadd.s32 %v118, 536870912
      %v120 = vshrl.u32 %v119, 30
      %v121 = vshll.u32 %v120, 30
      %v122 = vsub.s32 %v118, %v121
      %vm123 = vcmp.lt.s32.totalorder %v122, 0
      %v124 = vsub.s32 0, %v122
      %v125 = vsel %vm123, %v124, %v122
      %v126 = vclz %v125
      %v127 = vsub.s32 %v126, 2
      %vm128 = vcmp.gt.s32.totalorder 0, %v127
      %v129 = vsel %vm128, 0, %v127
      %v130 = vsub.s32 32, %v129
      %v131 = vshll.u32 %v122, %v129
      %v132 = vshrl.u32 %v114, %v130
      %v133 = vor.u32 %v131, %v132
      %v134 = vsub.s32 4294967266, %v129
      %v135 = vadd.s32 %v134, 127
      %v136 = vshll.u32 %v135, 23
      %v137 = vor.u32 4788187, %v136
      %v138 = vand.u32 2147483647, %v137
      %v140 = vcvt.s32.f32 %v133
      %v141 = vmul.f32 %v140, %v138
      %v142 = vxor.u32 %v141, 2147483648
      %v143 = vsel %vm60, %v142, %v141
      %v144 = vsub.s32 4, %v120
      %v145 = vsel %vm60, %v144, %v120
      %v146 = vsel %vm59, %v56, %v143
      %v147 = vsel %vm59, 0, %v145
      %v148 = vcosq.f32.pop %v146
      %v149 = vsinq.f32.pop %v146
      %vm150 = vweird.f32 %v56
      %v151 = vand.u32 %v147, 3
      %vm152 = vcmp.lt.s32.totalorder %v151, 2
      %vm153 = vcmp.eq.s32.totalorder %v151, 0
      %v154 = vxor.u32 %v149, 2147483648
      %v155 = vsel %vm153, %v148, %v154
      %vm156 = vcmp.eq.s32.totalorder %v151, 2
      %v157 = vxor.u32 %v148, 2147483648
      %v158 = vsel %vm156, %v157, %v149
      %v159 = vsel %vm152, %v155, %v158
      %v160 = vsel %vm150, nan, %v159
      %v161 = vand.u32 2147483647, %v57
      %vm162 = vcmp.le.f32.partialorder %v161, 0.7853982
      %vm163 = vcmp.lt.s32.totalorder %v57, 0
      %v164 = vand.u32 %v57, 2139095040
      %v165 = vshrl.u32 %v164, 23
      %v166 = vsub.s32 %v165, 127
      %v167 = vand.u32 2147483647, %v57
      %v168 = vand.u32 %v167, 8388607
      %v169 = vor.u32 %v168, 8388608
      %v170 = vsub.s32 0, %v169
      %v171 = vadd.s32 %v166, 1
      %vm172 = vcmp.gt.s32.totalorder %v171, 0
      %v173 = vsel %vm172, %v171, 0
      %v174 = vshrl.u32 %v173, 5
      %v175 = vand.u32 %v173, 31
      %v176 = vsub.s32 32, %v175
      %v177 = vshrl.u32 683565275, %v176
      %v178 = vshll.u32 683565275, %v175
      %v179 = vshrl.u32 2475754826, %v176
      %v180 = vor.u32 %v178, %v179
      %v181 = vshll.u32 2475754826, %v175
      %v182 = vshrl.u32 2131351028, %v176
      %v183 = vor.u32 %v181, %v182
      %v184 = vshll.u32 2131351028, %v175
      %v185 = vshrl.u32 2102212464, %v176
      %v186 = vor.u32 %v184, %v185
      %v187 = vshll.u32 2102212464, %v175
      %v188 = vshrl.u32 920167782, %v176
      %v189 = vor.u32 %v187, %v188
      %v190 = vshll.u32 920167782, %v175
      %v191 = vshrl.u32 1326507024, %v176
      %v192 = vor.u32 %v190, %v191
      %vm193 = vcmp.lt.s32.totalorder %v174, 1
      %vm194 = vcmp.lt.s32.totalorder %v174, 2
      %vm195 = vcmp.lt.s32.totalorder %v174, 3
      %vm196 = vcmp.lt.s32.totalorder %v174, 4
      %v197 = vsel %vm193, %v177, %v180
      %v198 = vsel %vm196, %v186, 2102212464
      %v199 = vsel %vm195, %v183, %v198
      %v200 = vsel %vm194, %v197, %v199
      %v201 = vsel %vm193, %v180, %v183
      %v202 = vsel %vm196, %v189, 920167782
      %v203 = vsel %vm195, %v186, %v202
      %v204 = vsel %vm194, %v201, %v203
      %v205 = vsel %vm193, %v183, %v186
      %v206 = vsel %vm196, %v192, 1326507024
      %v207 = vsel %vm195, %v189, %v206
      %v208 = vsel %vm194, %v205, %v207
      %v209 = vshll.u32 %v169, 8
      %v210 = vmul.u32.u64.compose %v209, %v208
      %v211 = vextract.low.u32 %v210
      %v212 = vextract.high.u32 %v210
      %v213 = vmul.u32.u64.compose %v209, %v204
      %v214 = vextract.low.u32 %v213
      %v215 = vextract.high.u32 %v213
      %v216 = vmul.u32 %v209, %v200
      %v217 = vadd.s32 %v212, %v214
      %vm218 = vc.u32 %v212, %v214
      %v219 = vadd.s32 %v215, 1
      %v220 = vsel %vm218, %v219, %v215
      %v221 = vadd.s32 %v216, %v220
      %v222 = vadd.s32 %v221, 536870912
      %v223 = vshrl.u32 %v222, 30
      %v224 = vshll.u32 %v223, 30
      %v225 = vsub.s32 %v221, %v224
      %vm226 = vcmp.lt.s32.totalorder %v225, 0
      %v227 = vsub.s32 0, %v225
      %v228 = vsel %vm226, %v227, %v225
      %v229 = vclz %v228
      %v230 = vsub.s32 %v229, 2
      %vm231 = vcmp.gt.s32.totalorder 0, %v230
      %v232 = vsel %vm231, 0, %v230
      %v233 = vsub.s32 32, %v232
      %v234 = vshll.u32 %v225, %v232
      %v235 = vshrl.u32 %v217, %v233
      %v236 = vor.u32 %v234, %v235
      %v237 = vsub.s32 4294967266, %v232
      %v238 = vadd.s32 %v237, 127
      %v239 = vshll.u32 %v238, 23
      %v240 = vor.u32 4788187, %v239
      %v241 = vand.u32 2147483647, %v240
      %v243 = vcvt.s32.f32 %v236
      %v244 = vmul.f32 %v243, %v241
      %v245 = vxor.u32 %v244, 2147483648
      %v246 = vsel %vm163, %v245, %v244
      %v247 = vsub.s32 4, %v223
      %v248 = vsel %vm163, %v247, %v223
      %v249 = vsel %vm162, %v57, %v246
      %v250 = vsel %vm162, 0, %v248
      %v251 = vcosq.f32.pop %v249
      %v252 = vsinq.f32.pop %v249
      %vm253 = vweird.f32 %v57
      %v254 = vand.u32 %v250, 3
      %vm255 = vcmp.lt.s32.totalorder %v254, 2
      %vm256 = vcmp.eq.s32.totalorder %v254, 0
      %v257 = vxor.u32 %v252, 2147483648
      %v258 = vsel %vm256, %v251, %v257
      %vm259 = vcmp.eq.s32.totalorder %v254, 2
      %v260 = vxor.u32 %v251, 2147483648
      %v261 = vsel %vm259, %v260, %v252
      %v262 = vsel %vm255, %v258, %v261
      %v263 = vsel %vm253, nan, %v262
      %264 = vst [vmem:[#allocation2] sm:$0xff] %v160
      %265 = vst [vmem:[#allocation2 + $0x8] sm:$0xff] %v263
      %v266 = vand.u32 2147483647, %v56
      %vm267 = vcmp.le.f32.partialorder %v266, 0.7853982
      %vm268 = vcmp.lt.s32.totalorder %v56, 0
      %v269 = vand.u32 %v56, 2139095040
      %v270 = vshrl.u32 %v269, 23
      %v271 = vsub.s32 %v270, 127
      %v272 = vand.u32 2147483647, %v56
      %v273 = vand.u32 %v272, 8388607
      %v274 = vor.u32 %v273, 8388608
      %v275 = vsub.s32 0, %v274
      %v276 = vadd.s32 %v271, 1
      %vm277 = vcmp.gt.s32.totalorder %v276, 0
      %v278 = vsel %vm277, %v276, 0
      %v279 = vshrl.u32 %v278, 5
      %v280 = vand.u32 %v278, 31
      %v281 = vsub.s32 32, %v280
      %v282 = vshrl.u32 683565275, %v281
      %v283 = vshll.u32 683565275, %v280
      %v284 = vshrl.u32 2475754826, %v281
      %v285 = vor.u32 %v283, %v284
      %v286 = vshll.u32 2475754826, %v280
      %v287 = vshrl.u32 2131351028, %v281
      %v288 = vor.u32 %v286, %v287
      %v289 = vshll.u32 2131351028, %v280
      %v290 = vshrl.u32 2102212464, %v281
      %v291 = vor.u32 %v289, %v290
      %v292 = vshll.u32 2102212464, %v280
      %v293 = vshrl.u32 920167782, %v281
      %v294 = vor.u32 %v292, %v293
      %v295 = vshll.u32 920167782, %v280
      %v296 = vshrl.u32 1326507024, %v281
      %v297 = vor.u32 %v295, %v296
      %vm298 = vcmp.lt.s32.totalorder %v279, 1
      %vm299 = vcmp.lt.s32.totalorder %v279, 2
      %vm300 = vcmp.lt.s32.totalorder %v279, 3
      %vm301 = vcmp.lt.s32.totalorder %v279, 4
      %v302 = vsel %vm298, %v282, %v285
      %v303 = vsel %vm301, %v291, 2102212464
      %v304 = vsel %vm300, %v288, %v303
      %v305 = vsel %vm299, %v302, %v304
      %v306 = vsel %vm298, %v285, %v288
      %v307 = vsel %vm301, %v294, 920167782
      %v308 = vsel %vm300, %v291, %v307
      %v309 = vsel %vm299, %v306, %v308
      %v310 = vsel %vm298, %v288, %v291
      %v311 = vsel %vm301, %v297, 1326507024
      %v312 = vsel %vm300, %v294, %v311
      %v313 = vsel %vm299, %v310, %v312
      %v314 = vshll.u32 %v274, 8
      %v315 = vmul.u32.u64.compose %v314, %v313
      %v316 = vextract.low.u32 %v315
      %v317 = vextract.high.u32 %v315
      %v318 = vmul.u32.u64.compose %v314, %v309
      %v319 = vextract.low.u32 %v318
      %v320 = vextract.high.u32 %v318
      %v321 = vmul.u32 %v314, %v305
      %v322 = vadd.s32 %v317, %v319
      %vm323 = vc.u32 %v317, %v319
      %v324 = vadd.s32 %v320, 1
      %v325 = vsel %vm323, %v324, %v320
      %v326 = vadd.s32 %v321, %v325
      %v327 = vadd.s32 %v326, 536870912
      %v328 = vshrl.u32 %v327, 30
      %v329 = vshll.u32 %v328, 30
      %v330 = vsub.s32 %v326, %v329
      %vm331 = vcmp.lt.s32.totalorder %v330, 0
      %v332 = vsub.s32 0, %v330
      %v333 = vsel %vm331, %v332, %v330
      %v334 = vclz %v333
      %v335 = vsub.s32 %v334, 2
      %vm336 = vcmp.gt.s32.totalorder 0, %v335
      %v337 = vsel %vm336, 0, %v335
      %v338 = vsub.s32 32, %v337
      %v339 = vshll.u32 %v330, %v337
      %v340 = vshrl.u32 %v322, %v338
      %v341 = vor.u32 %v339, %v340
      %v342 = vsub.s32 4294967266, %v337
      %v343 = vadd.s32 %v342, 127
      %v344 = vshll.u32 %v343, 23
      %v345 = vor.u32 4788187, %v344
      %v346 = vand.u32 2147483647, %v345
      %v348 = vcvt.s32.f32 %v341
      %v349 = vmul.f32 %v348, %v346
      %v350 = vxor.u32 %v349, 2147483648
      %v351 = vsel %vm268, %v350, %v349
      %v352 = vsub.s32 4, %v328
      %v353 = vsel %vm268, %v352, %v328
      %v354 = vsel %vm267, %v56, %v351
      %v355 = vsel %vm267, 0, %v353
      %v356 = vcosq.f32.pop %v354
      %v357 = vsinq.f32.pop %v354
      %vm358 = vweird.f32 %v56
      %v359 = vadd.s32 %v355, 3
      %v360 = vand.u32 %v359, 3
      %vm361 = vcmp.lt.s32.totalorder %v360, 2
      %vm362 = vcmp.eq.s32.totalorder %v360, 0
      %v363 = vxor.u32 %v357, 2147483648
      %v364 = vsel %vm362, %v356, %v363
      %vm365 = vcmp.eq.s32.totalorder %v360, 2
      %v366 = vxor.u32 %v356, 2147483648
      %v367 = vsel %vm365, %v366, %v357
      %v368 = vsel %vm361, %v364, %v367
      %v369 = vsel %vm358, nan, %v368
      %v370 = vand.u32 2147483647, %v57
      %vm371 = vcmp.le.f32.partialorder %v370, 0.7853982
      %vm372 = vcmp.lt.s32.totalorder %v57, 0
      %v373 = vand.u32 %v57, 2139095040
      %v374 = vshrl.u32 %v373, 23
      %v375 = vsub.s32 %v374, 127
      %v376 = vand.u32 2147483647, %v57
      %v377 = vand.u32 %v376, 8388607
      %v378 = vor.u32 %v377, 8388608
      %v379 = vsub.s32 0, %v378
      %v380 = vadd.s32 %v375, 1
      %vm381 = vcmp.gt.s32.totalorder %v380, 0
      %v382 = vsel %vm381, %v380, 0
      %v383 = vshrl.u32 %v382, 5
      %v384 = vand.u32 %v382, 31
      %v385 = vsub.s32 32, %v384
      %v386 = vshrl.u32 683565275, %v385
      %v387 = vshll.u32 683565275, %v384
      %v388 = vshrl.u32 2475754826, %v385
      %v389 = vor.u32 %v387, %v388
      %v390 = vshll.u32 2475754826, %v384
      %v391 = vshrl.u32 2131351028, %v385
      %v392 = vor.u32 %v390, %v391
      %v393 = vshll.u32 2131351028, %v384
      %v394 = vshrl.u32 2102212464, %v385
      %v395 = vor.u32 %v393, %v394
      %v396 = vshll.u32 2102212464, %v384
      %v397 = vshrl.u32 920167782, %v385
      %v398 = vor.u32 %v396, %v397
      %v399 = vshll.u32 920167782, %v384
      %v400 = vshrl.u32 1326507024, %v385
      %v401 = vor.u32 %v399, %v400
      %vm402 = vcmp.lt.s32.totalorder %v383, 1
      %vm403 = vcmp.lt.s32.totalorder %v383, 2
      %vm404 = vcmp.lt.s32.totalorder %v383, 3
      %vm405 = vcmp.lt.s32.totalorder %v383, 4
      %v406 = vsel %vm402, %v386, %v389
      %v407 = vsel %vm405, %v395, 2102212464
      %v408 = vsel %vm404, %v392, %v407
      %v409 = vsel %vm403, %v406, %v408
      %v410 = vsel %vm402, %v389, %v392
      %v411 = vsel %vm405, %v398, 920167782
      %v412 = vsel %vm404, %v395, %v411
      %v413 = vsel %vm403, %v410, %v412
      %v414 = vsel %vm402, %v392, %v395
      %v415 = vsel %vm405, %v401, 1326507024
      %v416 = vsel %vm404, %v398, %v415
      %v417 = vsel %vm403, %v414, %v416
      %v418 = vshll.u32 %v378, 8
      %v419 = vmul.u32.u64.compose %v418, %v417
      %v420 = vextract.low.u32 %v419
      %v421 = vextract.high.u32 %v419
      %v422 = vmul.u32.u64.compose %v418, %v413
      %v423 = vextract.low.u32 %v422
      %v424 = vextract.high.u32 %v422
      %v425 = vmul.u32 %v418, %v409
      %v426 = vadd.s32 %v421, %v423
      %vm427 = vc.u32 %v421, %v423
      %v428 = vadd.s32 %v424, 1
      %v429 = vsel %vm427, %v428, %v424
      %v430 = vadd.s32 %v425, %v429
      %v431 = vadd.s32 %v430, 536870912
      %v432 = vshrl.u32 %v431, 30
      %v433 = vshll.u32 %v432, 30
      %v434 = vsub.s32 %v430, %v433
      %vm435 = vcmp.lt.s32.totalorder %v434, 0
      %v436 = vsub.s32 0, %v434
      %v437 = vsel %vm435, %v436, %v434
      %v438 = vclz %v437
      %v439 = vsub.s32 %v438, 2
      %vm440 = vcmp.gt.s32.totalorder 0, %v439
      %v441 = vsel %vm440, 0, %v439
      %v442 = vsub.s32 32, %v441
      %v443 = vshll.u32 %v434, %v441
      %v444 = vshrl.u32 %v426, %v442
      %v445 = vor.u32 %v443, %v444
      %v446 = vsub.s32 4294967266, %v441
      %v447 = vadd.s32 %v446, 127
      %v448 = vshll.u32 %v447, 23
      %v449 = vor.u32 4788187, %v448
      %v450 = vand.u32 2147483647, %v449
      %v452 = vcvt.s32.f32 %v445
      %v453 = vmul.f32 %v452, %v450
      %v454 = vxor.u32 %v453, 2147483648
      %v455 = vsel %vm372, %v454, %v453
      %v456 = vsub.s32 4, %v432
      %v457 = vsel %vm372, %v456, %v432
      %v458 = vsel %vm371, %v57, %v455
      %v459 = vsel %vm371, 0, %v457
      %v460 = vcosq.f32.pop %v458
      %v461 = vsinq.f32.pop %v458
      %vm462 = vweird.f32 %v57
      %v463 = vadd.s32 %v459, 3
      %v464 = vand.u32 %v463, 3
      %vm465 = vcmp.lt.s32.totalorder %v464, 2
      %vm466 = vcmp.eq.s32.totalorder %v464, 0
      %v467 = vxor.u32 %v461, 2147483648
      %v468 = vsel %vm466, %v460, %v467
      %vm469 = vcmp.eq.s32.totalorder %v464, 2
      %v470 = vxor.u32 %v460, 2147483648
      %v471 = vsel %vm469, %v470, %v461
      %v472 = vsel %vm465, %v468, %v471
      %v473 = vsel %vm462, nan, %v472
      %v474 = vsub.f32 0.0, %v369
      %v475 = vsub.f32 0.0, %v473
      %v476 = vsel %vm32, %v474, %v369
      %v477 = vsel %vm32, %v475, %v473
      %478 = vst [vmem:[#allocation3] sm:$0xff] %v476
      %479 = vst [vmem:[#allocation3 + $0x8] sm:$0xff] %v477
    $region21: #{tpu_custom_call.1} parent=1 // pred_fallthru
      _
    %v480 = vld [vmem:[#allocation2] sm:$0xff]
    %v481 = vld [vmem:[#allocation2 + $0x8] sm:$0xff]
    %v482 = vld [vmem:[#allocation3] sm:$0xff]
    %v483 = vld [vmem:[#allocation3 + $0x8] sm:$0xff]
    %v484 = vld [vmem:[#allocation4] sm:$0xff]
    %v485 = vld [vmem:[#allocation4 + $0x8] sm:$0xff]
    %486 = vrot.lane.b32.xlu0 %v484, 127
    %v487 = vpop.permute.xlu0 %486
    %488 = vrot.lane.b32.xlu0 %v485, 127
    %v489 = vpop.permute.xlu0 %488
    %490 = vrot.lane.b32.xlu0 %v484, 1
    %v491 = vpop.permute.xlu0 %490
    %492 = vrot.lane.b32.xlu0 %v485, 1
    %v493 = vpop.permute.xlu0 %492
    %v494 = vsel %vm32, %v487, %v491
    %v495 = vsel %vm32, %v489, %v493
    %v496 = vmul.f32 %v484, %v480
    %v497 = vmul.f32 %v485, %v481
    %v498 = vmul.f32 %v494, %v482
    %v499 = vmul.f32 %v495, %v483
    %v500 = vadd.f32 %v496, %v498
    %v501 = vadd.f32 %v497, %v499
    %502 = vst [vmem:[#allocation7] sm:$0xff] %v500
    %503 = vst [vmem:[#allocation7 + $0x8] sm:$0xff] %v501
    %s504 = scalar_lea.vmem [#allocation4], 16
    %v505 = vld [vmem:[%s504] sm:$0xff]
    %v506 = vld [vmem:[%s504 + $0x8] sm:$0xff]
    %507 = vrot.lane.b32.xlu0 %v505, 127
    %v508 = vpop.permute.xlu0 %507
    %509 = vrot.lane.b32.xlu0 %v506, 127
    %v510 = vpop.permute.xlu0 %509
    %511 = vrot.lane.b32.xlu0 %v505, 1
    %v512 = vpop.permute.xlu0 %511
    %513 = vrot.lane.b32.xlu0 %v506, 1
    %v514 = vpop.permute.xlu0 %513
    %v515 = vsel %vm32, %v508, %v512
    %v516 = vsel %vm32, %v510, %v514
    %v517 = vmul.f32 %v505, %v480
    %v518 = vmul.f32 %v506, %v481
    %v519 = vmul.f32 %v515, %v482
    %v520 = vmul.f32 %v516, %v483
    %v521 = vadd.f32 %v517, %v519
    %v522 = vadd.f32 %v518, %v520
    %s523 = scalar_lea.vmem [#allocation7], 16
    %524 = vst [vmem:[%s523] sm:$0xff] %v521
    %525 = vst [vmem:[%s523 + $0x8] sm:$0xff] %v522
    // Predicated region
    $region22: #{tpu_custom_call.1} parent=1 // pred_check
      _
    $region23: #{tpu_custom_call.1} parent=1 // pred_check_branch
      %527 = sbr.rel (0) target = $region25
    $region24: #{tpu_custom_call.1} parent=1 // pred_region
      %s529 = ssub.s32 512, 512
      %530 = vsyncadd [#allocation6], %s529
      %s531 = sshll.u32 [#allocation7], 4
      %s532 = int_to_ptr.vmem [resolvable:$true] %s531
      %537 = dma.vmem_to_hbm [thread:$0]  %s532, 512, %s3, [#allocation6], 128, 128, 8
    $region25: #{tpu_custom_call.1} parent=1 // pred_fallthru
      _
    // Predicated region
    $region26: #{tpu_custom_call.1} parent=1 // pred_check
      _
    $region27: #{tpu_custom_call.1} parent=1 // pred_check_branch
      %539 = sbr.rel (0) target = $region29
    $region28: #{tpu_custom_call.1} parent=1 // pred_region
      %540 = dma.done [#allocation6], 512
    $region29: #{tpu_custom_call.1} parent=1 // pred_fallthru
      _
    %541 = vsyncpa [#allocation5], 1
    %542 = vsyncpa [#allocation6], 1

// kernel: tpu_custom_call.1
$region0: #{tpu_custom_call.1}
  #allocation0 [shape = 'u32[]', space=smem, size = 0x4, offset = 0x4, fixed_abs, tag = 'smem constant byte address 0x4 - core index']
  #allocation1 [shape = 'u32[144,128]{1,0:T(1,128)}', space=vmem, size = 0x12000, scoped, tag = 'internal scratch']
  %s0 = inlined_call_operand.hbm [shape: f32[16,128], index: 0, kind: input, shape index: {}]
  %s1 = inlined_call_operand.hbm [shape: f32[16,128], index: 1, kind: input, shape index: {}]
  %s2 = inlined_call_operand.hbm [shape: f32[2,16,128], index: 2, kind: input, shape index: {}]
  %s3 = inlined_call_operand.hbm [shape: f32[2,16,128], index: 3, kind: output, shape index: {}]
  %s4 = sld [smem:[#allocation0]]
  $region34: #{tpu_custom_call.1} parent=0
    _
  %s6 = ssub.s32 1, %s4
  %s7 = scalar_select 0, %s6, %s4
  $region1: #{tpu_custom_call.1} parent=0
    #allocation2 [shape = 'u8[8192]{0}', space=vmem, size = 0x2000, scoped, tag = 'input window, operand 0, single buffered']
    #allocation3 [shape = 's32[1]{0}', space=sflag, size = 0x4, scoped, tag = 'scoped memory for tpu_custom_call.1']
    #allocation4 [shape = 's32[1]{0}', space=sflag, size = 0x4, scoped, tag = 'scoped memory for tpu_custom_call.1']
    #allocation5 [shape = 'u8[8192]{0}', space=vmem, size = 0x2000, scoped, tag = 'input window, operand 1, single buffered']
    #allocation6 [shape = 's32[1]{0}', space=sflag, size = 0x4, scoped, tag = 'scoped memory for tpu_custom_call.1']
    #allocation7 [shape = 'u8[16384]{0}', space=vmem, size = 0x4000, scoped, tag = 'input window, operand 2, single buffered']
    #allocation8 [shape = 'u8[16384]{0}', space=vmem, size = 0x4000, scoped, tag = 'output window, operand 0, single buffered']
    %8 = vsyncpa [#allocation3], 0
    %9 = vsyncpa [#allocation6], 0
    %10 = vsyncpa [#allocation4], 0
    // Predicated region
    $region2: #{tpu_custom_call.1} parent=1 // pred_check
      _
    $region3: #{tpu_custom_call.1} parent=1 // pred_check_branch
      %12 = sbr.rel (0) target = $region5
    $region4: #{tpu_custom_call.1} parent=1 // pred_region
      %s14 = ssub.s32 256, 256
      %15 = vsyncadd [#allocation3], %s14
      %s16 = sshll.u32 [#allocation2], 4
      %s17 = int_to_ptr.vmem [resolvable:$true] %s16
      %22 = dma.hbm_to_vmem [thread:$0]  %s0, 256, %s17, [#allocation3], 128, 128, 8
    $region5: #{tpu_custom_call.1} parent=1 // pred_fallthru
      _
    // Predicated region
    $region6: #{tpu_custom_call.1} parent=1 // pred_check
      _
    $region7: #{tpu_custom_call.1} parent=1 // pred_check_branch
      %24 = sbr.rel (0) target = $region9
    $region8: #{tpu_custom_call.1} parent=1 // pred_region
      %s26 = ssub.s32 256, 256
      %27 = vsyncadd [#allocation6], %s26
      %s28 = sshll.u32 [#allocation5], 4
      %s29 = int_to_ptr.vmem [resolvable:$true] %s28
      %34 = dma.hbm_to_vmem [thread:$0]  %s1, 256, %s29, [#allocation6], 128, 128, 8
    $region9: #{tpu_custom_call.1} parent=1 // pred_fallthru
      _
    // Predicated region
    $region10: #{tpu_custom_call.1} parent=1 // pred_check
      _
    $region11: #{tpu_custom_call.1} parent=1 // pred_check_branch
      %36 = sbr.rel (0) target = $region13
    $region12: #{tpu_custom_call.1} parent=1 // pred_region
      %s38 = ssub.s32 512, 512
      %39 = vsyncadd [#allocation6], %s38
      %s40 = sshll.u32 [#allocation7], 4
      %s41 = int_to_ptr.vmem [resolvable:$true] %s40
      %46 = dma.hbm_to_vmem [thread:$0]  %s2, 512, %s41, [#allocation6], 128, 128, 8
    $region13: #{tpu_custom_call.1} parent=1 // pred_fallthru
      _
    // Predicated region
    $region14: #{tpu_custom_call.1} parent=1 // pred_check
      _
    $region15: #{tpu_custom_call.1} parent=1 // pred_check_branch
      %48 = sbr.rel (0) target = $region17
    $region16: #{tpu_custom_call.1} parent=1 // pred_region
      %49 = dma.done [#allocation3], 256
    $region17: #{tpu_custom_call.1} parent=1 // pred_fallthru
      _
    // Predicated region
    $region18: #{tpu_custom_call.1} parent=1 // pred_check
      _
    $region19: #{tpu_custom_call.1} parent=1 // pred_check_branch
      %51 = sbr.rel (0) target = $region21
    $region20: #{tpu_custom_call.1} parent=1 // pred_region
      %52 = dma.done [#allocation6], 256
    $region21: #{tpu_custom_call.1} parent=1 // pred_fallthru
      _
    // Predicated region
    $region22: #{tpu_custom_call.1} parent=1 // pred_check
      _
    $region23: #{tpu_custom_call.1} parent=1 // pred_check_branch
      %54 = sbr.rel (0) target = $region25
    $region24: #{tpu_custom_call.1} parent=1 // pred_region
      %55 = dma.done [#allocation6], 512
    $region25: #{tpu_custom_call.1} parent=1 // pred_fallthru
      _
    %v56 = vlaneseq
    %v57 = vand.u32 %v56, 127
    %v58 = vand.u32 %v57, 1
    %vm59 = vcmp.eq.s32.totalorder %v58, 0
    %v60 = vld [vmem:[#allocation2] sm:$0xff]
    %v61 = vld [vmem:[#allocation2 + $0x8] sm:$0xff]
    %v62 = vld [vmem:[#allocation5] sm:$0xff]
    %v63 = vld [vmem:[#allocation5 + $0x8] sm:$0xff]
    %v64 = vld [vmem:[#allocation7] sm:$0xff]
    %v65 = vld [vmem:[#allocation7 + $0x8] sm:$0xff]
    %66 = vrot.lane.b32.xlu0 %v64, 127
    %v67 = vpop.permute.xlu0 %66
    %68 = vrot.lane.b32.xlu0 %v65, 127
    %v69 = vpop.permute.xlu0 %68
    %70 = vrot.lane.b32.xlu0 %v64, 1
    %v71 = vpop.permute.xlu0 %70
    %72 = vrot.lane.b32.xlu0 %v65, 1
    %v73 = vpop.permute.xlu0 %72
    %v74 = vsel %vm59, %v67, %v71
    %v75 = vsel %vm59, %v69, %v73
    %v76 = vmul.f32 %v64, %v60
    %v77 = vmul.f32 %v65, %v61
    %v78 = vmul.f32 %v74, %v62
    %v79 = vmul.f32 %v75, %v63
    %v80 = vadd.f32 %v76, %v78
    %v81 = vadd.f32 %v77, %v79
    %82 = vst [vmem:[#allocation8] sm:$0xff] %v80
    %83 = vst [vmem:[#allocation8 + $0x8] sm:$0xff] %v81
    %s84 = scalar_lea.vmem [#allocation7], 16
    %v85 = vld [vmem:[%s84] sm:$0xff]
    %v86 = vld [vmem:[%s84 + $0x8] sm:$0xff]
    %87 = vrot.lane.b32.xlu0 %v85, 127
    %v88 = vpop.permute.xlu0 %87
    %89 = vrot.lane.b32.xlu0 %v86, 127
    %v90 = vpop.permute.xlu0 %89
    %91 = vrot.lane.b32.xlu0 %v85, 1
    %v92 = vpop.permute.xlu0 %91
    %93 = vrot.lane.b32.xlu0 %v86, 1
    %v94 = vpop.permute.xlu0 %93
    %v95 = vsel %vm59, %v88, %v92
    %v96 = vsel %vm59, %v90, %v94
    %v97 = vmul.f32 %v85, %v60
    %v98 = vmul.f32 %v86, %v61
    %v99 = vmul.f32 %v95, %v62
    %v100 = vmul.f32 %v96, %v63
    %v101 = vadd.f32 %v97, %v99
    %v102 = vadd.f32 %v98, %v100
    %s103 = scalar_lea.vmem [#allocation8], 16
    %104 = vst [vmem:[%s103] sm:$0xff] %v101
    %105 = vst [vmem:[%s103 + $0x8] sm:$0xff] %v102
    // Predicated region
    $region26: #{tpu_custom_call.1} parent=1 // pred_check
      _
    $region27: #{tpu_custom_call.1} parent=1 // pred_check_branch
      %107 = sbr.rel (0) target = $region29
    $region28: #{tpu_custom_call.1} parent=1 // pred_region
      %s109 = ssub.s32 512, 512
      %110 = vsyncadd [#allocation4], %s109
      %s111 = sshll.u32 [#allocation8], 4
      %s112 = int_to_ptr.vmem [resolvable:$true] %s111
      %117 = dma.vmem_to_hbm [thread:$0]  %s112, 512, %s3, [#allocation4], 128, 128, 8
    $region29: #{tpu_custom_call.1} parent=1 // pred_fallthru
      _
    // Predicated region
    $region30: #{tpu_custom_call.1} parent=1 // pred_check
      _
    $region31: #{tpu_custom_call.1} parent=1 // pred_check_branch
      %119 = sbr.rel (0) target = $region33
    $region32: #{tpu_custom_call.1} parent=1 // pred_region
      %120 = dma.done [#allocation4], 512
    $region33: #{tpu_custom_call.1} parent=1 // pred_fallthru
      _
    %121 = vsyncpa [#allocation3], 1
    %122 = vsyncpa [#allocation6], 1
    %123 = vsyncpa [#allocation4], 1

</llo_original>
